<compile_context>
chip_gen: v7x
topology: tpu7x:2x2x1
jax: 0.10.0
libtpu: 0.0.40
codegen_flags: <defaults>
</compile_context>

<pallas_src>
import functools

import jax
import jax.numpy as jnp
from jax.experimental import pallas as pl
from jax.experimental.pallas import tpu as pltpu

NUM_CLASSES = 11        # TaskClassifier output width
LANE_PAD = 128          # lane-padded width of the MXU weight operand (VMEM only)
MAX_TILE_M = 2048       # upper bound on the row tile (amortizes ~0.35us/step)
MAX_TK = 8192           # feature (K) tile: split only for very wide F
_DEFAULT_MIN_PALLAS_ROWS = 1024   # below this a fused XLA GEMV wins

_SINGLE_BUFFER_SUPPORTED = True   # flipped off once if Buffered(1) is rejected


def _retrieve_interval(dataset_type: str):
    if dataset_type == 'gcdc':
        return (0, 3)
    if dataset_type == 'persuasiveness':
        return (3, 6)
    if dataset_type == 'hyperpartisan':
        return (9, 1)
    if dataset_type == 'fake_news':
        return (10, 1)
    raise ValueError(f'{dataset_type} is not recognized as a dataset type')


def _round_up(x, m):
    return ((x + m - 1) // m) * m


def _vmem_capacity_bytes():
    try:
        return int(pltpu.get_tpu_info().vmem_capacity_bytes)
    except Exception:
        return 128 << 20   # v5e/v6e capacity; v7x has 64 MiB per TensorCore


def _choose_tiles(n, f, itemsize):
    """Row tile, K tile, #K tiles and an explicit VMEM limit (per generation)."""
    sub = {4: 8, 2: 16, 1: 32}.get(itemsize, 8)      # sublane packing per dtype

    # Generation-aware total-VMEM budget for this kernel: ~3/4 of capacity,
    # i.e. ~48 MiB on v7x and ~96 MiB on v5e/v6e.
    total_budget = (_vmem_capacity_bytes() * 3) // 4

    # K (feature) tiling only for very wide feature dims; tk must divide F and
    # be a multiple of 128 so no reduction step ever touches a masked K block.
    tk = f
    if f > MAX_TK and f % 128 == 0:
        tk = MAX_TK
        while f % tk:
            tk -= 128
    k_tiles = pl.cdiv(f, tk)

    # VMEM accounting (bytes): double-buffered x tile + (worst case) double-
    # buffered weight + bias + double-buffered lane-padded f32 output block +
    # f32 accumulator scratch.
    resident = 2 * tk * LANE_PAD * itemsize + 2 * LANE_PAD * 4
    headroom = 2 << 20
    per_row = 2 * tk * itemsize + 2 * LANE_PAD * 4 + LANE_PAD * 4
    rows_vmem = max(sub, (total_budget - resident - headroom) // per_row // sub * sub)
    # Keep >= ~4 row-grid steps so both v7x TensorCores get work.
    rows_mc = max(sub, _round_up(pl.cdiv(n, 4), sub))
    tile_m = max(sub, min(MAX_TILE_M, rows_vmem, rows_mc, _round_up(n, sub)))

    vmem_need = tile_m * per_row + resident + headroom
    vmem_limit = int(min(total_budget, max(vmem_need, 32 << 20)))
    return tile_m, tk, k_tiles, vmem_limit


def _task_classifier_kernel(x_ref, w_ref, b_ref, o_ref, acc_ref, *,
                            length, apply_sigmoid):
    """(row tile, K tile): acc += x @ W_pad; on the last K tile add the bias,
    keep the first `length` columns and (statically) apply the sigmoid."""
    k = pl.program_id(1)

    @pl.when(k == 0)
    def _():
        acc_ref[...] = jnp.zeros_like(acc_ref)

    acc_ref[...] += jnp.dot(x_ref[...], w_ref[...],
                            preferred_element_type=jnp.float32)

    @pl.when(k == pl.num_programs(1) - 1)
    def _():
        out = acc_ref[...] + b_ref[...]          # (tile_m,128) + (1,128)
        out = out[:, :length]
        if apply_sigmoid:                        # static: only columns 9/10
            out = jax.nn.sigmoid(out)
        o_ref[...] = out.astype(o_ref.dtype)


def prepare_task_classifier_params(weight, bias, dataset_type: str,
                                   dtype=jnp.float32):
    """Once-per-model prep (outside the hot path): slice to the dataset's
    surviving columns and build the lane-padded, pre-transposed MXU weight in
    the compute dtype (f32 or bf16)."""
    start, length = _retrieve_interval(dataset_type)
    # Every known interval lies entirely on one side of the sigmoid boundary
    # (column 9); assert so a future straddling interval cannot silently get a
    # wrong static sigmoid decision.
    assert start + length <= 9 or start >= 9, (dataset_type, start, length)
    apply_sigmoid = start >= 9
    f = weight.shape[1]
    w_sel = jnp.asarray(weight, jnp.float32)[start:start + length]   # (length,F)
    b_sel = jnp.asarray(bias, jnp.float32)[start:start + length]     # (length,)
    w_t = (jnp.zeros((f, LANE_PAD), jnp.float32)
           .at[:, :length].set(w_sel.T).astype(dtype))               # (F,128)
    b_p = jnp.zeros((1, LANE_PAD), jnp.float32).at[0, :length].set(b_sel)
    return w_t, b_p, length, apply_sigmoid


@functools.partial(jax.jit, static_argnames=("length", "apply_sigmoid",
                                             "single_buffer_resident"))
def _pallas_forward(x, w_t, b_p, *, length, apply_sigmoid,
                    single_buffer_resident=True):
    n, f = x.shape
    w_t = w_t.astype(x.dtype)            # no-op when prepared in x's dtype
    b_p = b_p.astype(jnp.float32)        # bias always added in the f32 acc
    itemsize = jnp.dtype(x.dtype).itemsize
    tile_m, tk, k_tiles, vmem_limit = _choose_tiles(n, f, itemsize)

    # Single-buffer the grid-invariant operands (weight/bias) to reclaim VMEM
    # for the x tile.
    # TODO(synk): sweep pl.Buffered(3) on the x BlockSpec on v7x (HW sweep).
    resident_kwargs = {}
    if single_buffer_resident and k_tiles == 1 and hasattr(pl, "Buffered"):
        resident_kwargs = dict(pipeline_mode=pl.Buffered(1))

    kernel = functools.partial(_task_classifier_kernel,
                               length=length, apply_sigmoid=apply_sigmoid)
    out = pl.pallas_call(
        kernel,
        out_shape=jax.ShapeDtypeStruct((n, length), jnp.float32),
        grid_spec=pltpu.PrefetchScalarGridSpec(
            num_scalar_prefetch=0,
            grid=(pl.cdiv(n, tile_m), k_tiles),
            in_specs=[
                pl.BlockSpec((tile_m, tk), lambda i, k: (i, k)),      # x tile
                pl.BlockSpec((tk, LANE_PAD), lambda i, k: (k, 0),     # weight
                             **resident_kwargs),
                pl.BlockSpec((1, LANE_PAD), lambda i, k: (0, 0),      # bias
                             **resident_kwargs),
            ],
            out_specs=pl.BlockSpec((tile_m, length), lambda i, k: (i, 0)),
            scratch_shapes=[pltpu.VMEM((tile_m, LANE_PAD), jnp.float32)],
        ),
        compiler_params=pltpu.CompilerParams(
            dimension_semantics=("parallel", "arbitrary"),
            vmem_limit_bytes=vmem_limit),
        cost_estimate=pl.CostEstimate(
            flops=2 * n * f * LANE_PAD,
            transcendentals=(n * length) if apply_sigmoid else 0,
            bytes_accessed=(n * f * itemsize + f * LANE_PAD * itemsize
                            + LANE_PAD * 4 + n * length * 4)),
    )(x, w_t, b_p)
    return out.astype(x.dtype)


@functools.partial(jax.jit, static_argnames=("length", "apply_sigmoid"))
def _xla_forward(x, w_t, b_p, *, length, apply_sigmoid):
    """Tiny-batch path: plain fused XLA matmul (pallas fixed cost dominates)."""
    out = jnp.dot(x, w_t[:, :length].astype(x.dtype),
                  preferred_element_type=jnp.float32) + b_p[0, :length]
    if apply_sigmoid:
        out = jax.nn.sigmoid(out)
    return out.astype(x.dtype)


def task_classifier_wrapper_forward(x, w_t, b_p, length, apply_sigmoid,
                                    min_pallas_rows=_DEFAULT_MIN_PALLAS_ROWS):
    """x: (N, F) f32/bf16; w_t: (F, 128) lane-padded; b_p: (1, 128) f32.
    Returns the (N, length) narrow of the TaskClassifier output (in x.dtype)."""
    global _SINGLE_BUFFER_SUPPORTED
    if x.shape[0] < min_pallas_rows:
        return _xla_forward(x, w_t, b_p, length=length,
                            apply_sigmoid=apply_sigmoid)
    if _SINGLE_BUFFER_SUPPORTED:
        try:
            return _pallas_forward(x, w_t, b_p, length=length,
                                   apply_sigmoid=apply_sigmoid,
                                   single_buffer_resident=True)
        except Exception:
            # pipeline_mode=pl.Buffered(1) not supported on this JAX version:
            # fall back to default double-buffered resident operands.
            _SINGLE_BUFFER_SUPPORTED = False
    return _pallas_forward(x, w_t, b_p, length=length,
                           apply_sigmoid=apply_sigmoid,
                           single_buffer_resident=False)


def _reference(x, weight, bias, dataset_type):
    """Pure-JAX reference mirroring the PyTorch forward (f32)."""
    out = x @ weight.T + bias
    k = jnp.concatenate([out[:, :9], jax.nn.sigmoid(out[:, 9:11])], axis=1)
    start, length = _retrieve_interval(dataset_type)
    return k[:, start:start + length]


if __name__ == "__main__":
    key = jax.random.PRNGKey(0)
    batch, in_features = 2, 32

    kx, kw, kb = jax.random.split(key, 3)
    # Deterministic init mimicking nn.Linear default (uniform +-1/sqrt(F)).
    bound = 1.0 / (in_features ** 0.5)
    x = jax.random.normal(kx, (batch, in_features), jnp.float32)
    weight = jax.random.uniform(kw, (NUM_CLASSES, in_features), jnp.float32,
                                minval=-bound, maxval=bound)
    bias = jax.random.uniform(kb, (NUM_CLASSES,), jnp.float32,
                              minval=-bound, maxval=bound)

    for dataset_type in ('gcdc', 'persuasiveness', 'hyperpartisan', 'fake_news'):
        w_t, b_p, length, apply_sigmoid = prepare_task_classifier_params(
            weight, bias, dataset_type)
        ref = _reference(x, weight, bias, dataset_type)

        # Force the Pallas kernel even at this tiny batch (min_pallas_rows=0).
        out = task_classifier_wrapper_forward(x, w_t, b_p, length, apply_sigmoid,
                                              min_pallas_rows=0)
        out = jax.block_until_ready(out)
        assert out.shape == (batch, length), (dataset_type, out.shape)
        assert jnp.allclose(out, ref, atol=1e-5, rtol=1e-5), (dataset_type, out, ref)

        # Small-batch XLA fallback (default threshold) must match too.
        out_small = jax.block_until_ready(
            task_classifier_wrapper_forward(x, w_t, b_p, length, apply_sigmoid))
        assert jnp.allclose(out_small, ref, atol=1e-5, rtol=1e-5), dataset_type

    # bf16 streaming path: multi-step row grid, bf16 x / bf16 weight, f32 acc.
    n_big = 64
    x_big = jax.random.normal(jax.random.PRNGKey(1), (n_big, in_features),
                              jnp.float32)
    w_t16, b_p16, length, apply_sigmoid = prepare_task_classifier_params(
        weight, bias, 'persuasiveness', dtype=jnp.bfloat16)
    out16 = task_classifier_wrapper_forward(x_big.astype(jnp.bfloat16), w_t16,
                                            b_p16, length, apply_sigmoid,
                                            min_pallas_rows=0)
    out16 = jax.block_until_ready(out16)
    ref16 = _reference(x_big, weight, bias, 'persuasiveness')
    assert out16.shape == (n_big, length), out16.shape
    # bf16 inputs differ from the f32 reference at ~bf16 precision.
    assert jnp.allclose(out16.astype(jnp.float32), ref16, atol=5e-2, rtol=5e-2)

    print("KERNEL_OK")
</pallas_src>

<mosaic_0001>
module attributes {stable_mosaic.version = 11 : i64} {
  func.func @_task_classifier_kernel(%arg0: i32, %arg1: i32, %arg2: memref<8x32xf32, #tpu.memory_space<vmem>>, %arg3: memref<32x128xf32, #tpu.memory_space<vmem>>, %arg4: memref<1x128xf32, #tpu.memory_space<vmem>>, %arg5: memref<8x3xf32, #tpu.memory_space<vmem>>, %arg6: memref<8x128xf32, #tpu.memory_space<vmem>>) attributes {dimension_semantics = [#tpu.dimension_semantics<parallel>, #tpu.dimension_semantics<arbitrary>], iteration_bounds = array<i64: 1, 1>, scalar_prefetch = 0 : i64, scratch_operands = 1 : i64, tpu.core_type = #tpu.core_type<tc>, window_params = [{transform_indices = @transform_0, window_bounds = array<i64: 8, 32>}, {pipeline_mode = #tpu.pipeline_mode<synchronous>, transform_indices = @transform_1, window_bounds = array<i64: 32, 128>}, {pipeline_mode = #tpu.pipeline_mode<synchronous>, transform_indices = @transform_2, window_bounds = array<i64: 1, 128>}, {transform_indices = @transform_3, window_bounds = array<i64: 8, 3>}]} {
    %c0_i32 = arith.constant 0 : i32
    %0 = arith.cmpi eq, %arg1, %c0_i32 : i32
    %1 = arith.extui %0 : i1 to i32
    %c0_i32_0 = arith.constant 0 : i32
    %2 = arith.cmpi ne, %1, %c0_i32_0 : i32
    scf.if %2 {
      %cst_10 = arith.constant 0.000000e+00 : f32
      %12 = vector.broadcast %cst_10 : f32 to vector<8x128xf32>
      %c0_11 = arith.constant 0 : index
      %c0_12 = arith.constant 0 : index
      %13 = vector.load %arg6[%c0_11, %c0_12] : memref<8x128xf32, #tpu.memory_space<vmem>>, vector<8x128xf32>
      tpu.vector_store %arg6[%c0_11, %c0_12], %12 {strides = array<i32>} : memref<8x128xf32, #tpu.memory_space<vmem>>, vector<8x128xf32>,
    } else {
    }
    %c0 = arith.constant 0 : index
    %c0_1 = arith.constant 0 : index
    %3 = vector.load %arg6[%c0, %c0_1] : memref<8x128xf32, #tpu.memory_space<vmem>>, vector<8x128xf32>
    %c0_2 = arith.constant 0 : index
    %c0_3 = arith.constant 0 : index
    %4 = vector.load %arg2[%c0_2, %c0_3] : memref<8x32xf32, #tpu.memory_space<vmem>>, vector<8x32xf32>
    %c0_4 = arith.constant 0 : index
    %c0_5 = arith.constant 0 : index
    %5 = vector.load %arg3[%c0_4, %c0_5] : memref<32x128xf32, #tpu.memory_space<vmem>>, vector<32x128xf32>
    %cst = arith.constant dense<0.000000e+00> : vector<8x128xf32>
    %6 = tpu.matmul %4, %5, %cst {dimension_numbers = #tpu.dot_dimension_numbers<[1], [0], [0], [1], [0, 0, 1, 1], [], []>} : vector<8x32xf32>, vector<32x128xf32>, vector<8x128xf32> -> vector<8x128xf32>
    %7 = arith.addf %3, %6 : vector<8x128xf32>
    %c0_6 = arith.constant 0 : index
    %c0_7 = arith.constant 0 : index
    %8 = vector.load %arg6[%c0_6, %c0_7] : memref<8x128xf32, #tpu.memory_space<vmem>>, vector<8x128xf32>
    tpu.vector_store %arg6[%c0_6, %c0_7], %7 {strides = array<i32>} : memref<8x128xf32, #tpu.memory_space<vmem>>, vector<8x128xf32>,
    %c0_i32_8 = arith.constant 0 : i32
    %9 = arith.cmpi eq, %arg1, %c0_i32_8 : i32
    %10 = arith.extui %9 : i1 to i32
    %c0_i32_9 = arith.constant 0 : i32
    %11 = arith.cmpi ne, %10, %c0_i32_9 : i32
    scf.if %11 {
      %c0_10 = arith.constant 0 : index
      %c0_11 = arith.constant 0 : index
      %12 = vector.load %arg6[%c0_10, %c0_11] : memref<8x128xf32, #tpu.memory_space<vmem>>, vector<8x128xf32>
      %c0_12 = arith.constant 0 : index
      %c0_13 = arith.constant 0 : index
      %13 = vector.load %arg4[%c0_12, %c0_13] : memref<1x128xf32, #tpu.memory_space<vmem>>, vector<1x128xf32>
      %14 = vector.broadcast %13 : vector<1x128xf32> to vector<8x128xf32>
      %15 = arith.addf %12, %14 : vector<8x128xf32>
      %16 = vector.extract_strided_slice %15 {offsets = [0, 0], sizes = [8, 3], strides = [1, 1]} : vector<8x128xf32> to vector<8x3xf32>
      %c0_14 = arith.constant 0 : index
      %c0_15 = arith.constant 0 : index
      %17 = vector.load %arg5[%c0_14, %c0_15] : memref<8x3xf32, #tpu.memory_space<vmem>>, vector<8x3xf32>
      tpu.vector_store %arg5[%c0_14, %c0_15], %16 {strides = array<i32>} : memref<8x3xf32, #tpu.memory_space<vmem>>, vector<8x3xf32>,
    } else {
    }
    return
  }
  func.func @transform_0(%arg0: i32, %arg1: i32) -> (i32, i32) {
    %c0_i32 = arith.constant 0 : i32
    return %arg0, %arg1 : i32, i32
  }
  func.func @transform_1(%arg0: i32, %arg1: i32) -> (i32, i32) {
    %c0_i32 = arith.constant 0 : i32
    %c0_i32_0 = arith.constant 0 : i32
    return %arg1, %c0_i32 : i32, i32
  }
  func.func @transform_2(%arg0: i32, %arg1: i32) -> (i32, i32) {
    %c0_i32 = arith.constant 0 : i32
    %c0_i32_0 = arith.constant 0 : i32
    %c0_i32_1 = arith.constant 0 : i32
    return %c0_i32, %c0_i32_0 : i32, i32
  }
  func.func @transform_3(%arg0: i32, %arg1: i32) -> (i32, i32) {
    %c0_i32 = arith.constant 0 : i32
    %c0_i32_0 = arith.constant 0 : i32
    return %arg0, %c0_i32 : i32, i32
  }
}

module attributes {stable_mosaic.version = 11 : i64} {
  func.func @_task_classifier_kernel(%arg0: i32, %arg1: i32, %arg2: memref<8x32xf32, #tpu.memory_space<vmem>>, %arg3: memref<32x128xf32, #tpu.memory_space<vmem>>, %arg4: memref<1x128xf32, #tpu.memory_space<vmem>>, %arg5: memref<8x3xf32, #tpu.memory_space<vmem>>, %arg6: memref<8x128xf32, #tpu.memory_space<vmem>>) attributes {dimension_semantics = [#tpu.dimension_semantics<parallel>, #tpu.dimension_semantics<arbitrary>], iteration_bounds = array<i64: 1, 1>, scalar_prefetch = 0 : i64, scratch_operands = 1 : i64, tpu.core_type = #tpu.core_type<tc>, window_params = [{transform_indices = @transform_0, window_bounds = array<i64: 8, 32>}, {transform_indices = @transform_1, window_bounds = array<i64: 32, 128>}, {pipeline_mode = #tpu.pipeline_mode<synchronous>, transform_indices = @transform_2, window_bounds = array<i64: 1, 128>}, {transform_indices = @transform_3, window_bounds = array<i64: 8, 3>}]} {
    %c0_i32 = arith.constant 0 : i32
    %0 = arith.cmpi eq, %arg1, %c0_i32 : i32
    %1 = arith.extui %0 : i1 to i32
    %c0_i32_0 = arith.constant 0 : i32
    %2 = arith.cmpi ne, %1, %c0_i32_0 : i32
    scf.if %2 {
      %cst_10 = arith.constant 0.000000e+00 : f32
      %12 = vector.broadcast %cst_10 : f32 to vector<8x128xf32>
      %c0_11 = arith.constant 0 : index
      %c0_12 = arith.constant 0 : index
      %13 = vector.load %arg6[%c0_11, %c0_12] : memref<8x128xf32, #tpu.memory_space<vmem>>, vector<8x128xf32>
      tpu.vector_store %arg6[%c0_11, %c0_12], %12 {strides = array<i32>} : memref<8x128xf32, #tpu.memory_space<vmem>>, vector<8x128xf32>,
    } else {
    }
    %c0 = arith.constant 0 : index
    %c0_1 = arith.constant 0 : index
    %3 = vector.load %arg6[%c0, %c0_1] : memref<8x128xf32, #tpu.memory_space<vmem>>, vector<8x128xf32>
    %c0_2 = arith.constant 0 : index
    %c0_3 = arith.constant 0 : index
    %4 = vector.load %arg2[%c0_2, %c0_3] : memref<8x32xf32, #tpu.memory_space<vmem>>, vector<8x32xf32>
    %c0_4 = arith.constant 0 : index
    %c0_5 = arith.constant 0 : index
    %5 = vector.load %arg3[%c0_4, %c0_5] : memref<32x128xf32, #tpu.memory_space<vmem>>, vector<32x128xf32>
    %cst = arith.constant dense<0.000000e+00> : vector<8x128xf32>
    %6 = tpu.matmul %4, %5, %cst {dimension_numbers = #tpu.dot_dimension_numbers<[1], [0], [0], [1], [0, 0, 1, 1], [], []>} : vector<8x32xf32>, vector<32x128xf32>, vector<8x128xf32> -> vector<8x128xf32>
    %7 = arith.addf %3, %6 : vector<8x128xf32>
    %c0_6 = arith.constant 0 : index
    %c0_7 = arith.constant 0 : index
    %8 = vector.load %arg6[%c0_6, %c0_7] : memref<8x128xf32, #tpu.memory_space<vmem>>, vector<8x128xf32>
    tpu.vector_store %arg6[%c0_6, %c0_7], %7 {strides = array<i32>} : memref<8x128xf32, #tpu.memory_space<vmem>>, vector<8x128xf32>,
    %c0_i32_8 = arith.constant 0 : i32
    %9 = arith.cmpi eq, %arg1, %c0_i32_8 : i32
    %10 = arith.extui %9 : i1 to i32
    %c0_i32_9 = arith.constant 0 : i32
    %11 = arith.cmpi ne, %10, %c0_i32_9 : i32
    scf.if %11 {
      %c0_10 = arith.constant 0 : index
      %c0_11 = arith.constant 0 : index
      %12 = vector.load %arg6[%c0_10, %c0_11] : memref<8x128xf32, #tpu.memory_space<vmem>>, vector<8x128xf32>
      %c0_12 = arith.constant 0 : index
      %c0_13 = arith.constant 0 : index
      %13 = vector.load %arg4[%c0_12, %c0_13] : memref<1x128xf32, #tpu.memory_space<vmem>>, vector<1x128xf32>
      %14 = vector.broadcast %13 : vector<1x128xf32> to vector<8x128xf32>
      %15 = arith.addf %12, %14 : vector<8x128xf32>
      %16 = vector.extract_strided_slice %15 {offsets = [0, 0], sizes = [8, 3], strides = [1, 1]} : vector<8x128xf32> to vector<8x3xf32>
      %c0_14 = arith.constant 0 : index
      %c0_15 = arith.constant 0 : index
      %17 = vector.load %arg5[%c0_14, %c0_15] : memref<8x3xf32, #tpu.memory_space<vmem>>, vector<8x3xf32>
      tpu.vector_store %arg5[%c0_14, %c0_15], %16 {strides = array<i32>} : memref<8x3xf32, #tpu.memory_space<vmem>>, vector<8x3xf32>,
    } else {
    }
    return
  }
  func.func @transform_0(%arg0: i32, %arg1: i32) -> (i32, i32) {
    %c0_i32 = arith.constant 0 : i32
    return %arg0, %arg1 : i32, i32
  }
  func.func @transform_1(%arg0: i32, %arg1: i32) -> (i32, i32) {
    %c0_i32 = arith.constant 0 : i32
    %c0_i32_0 = arith.constant 0 : i32
    return %arg1, %c0_i32 : i32, i32
  }
  func.func @transform_2(%arg0: i32, %arg1: i32) -> (i32, i32) {
    %c0_i32 = arith.constant 0 : i32
    %c0_i32_0 = arith.constant 0 : i32
    %c0_i32_1 = arith.constant 0 : i32
    return %c0_i32, %c0_i32_0 : i32, i32
  }
  func.func @transform_3(%arg0: i32, %arg1: i32) -> (i32, i32) {
    %c0_i32 = arith.constant 0 : i32
    %c0_i32_0 = arith.constant 0 : i32
    return %arg0, %c0_i32 : i32, i32
  }
}

</mosaic_0001>

<llo_original>
// kernel: _pallas_forward.1
$region0: #{_pallas_forward.1}
  #allocation0 [shape = 'u32[]', space=smem, size = 0x4, offset = 0x4, fixed_abs, tag = 'smem constant byte address 0x4 - core index']
  #allocation1 [shape = 'u32[144,128]{1,0:T(1,128)}', space=vmem, size = 0x12000, scoped, tag = 'internal scratch']
  #allocation2 [shape = 'f32[8,128]{1,0:T(8,128)}', space=vmem, size = 0x1000, scoped, tag = 'scratch operand']
  %s0 = inlined_call_operand.hbm [shape: f32[2,32], index: 0, kind: input, shape index: {}]
  %s1 = inlined_call_operand.hbm [shape: f32[32,128], index: 1, kind: input, shape index: {}]
  %s2 = inlined_call_operand.vmem [shape: f32[1,128], index: 2, kind: input, shape index: {}]
  %s3 = inlined_call_operand.hbm [shape: f32[2,3], index: 3, kind: output, shape index: {}]
  %s4 = sld [smem:[#allocation0]]
  $region38: #{_pallas_forward.1} parent=0
    _
  %s6 = ssub.s32 1, %s4
  %s7 = scalar_select 0, %s6, %s4
  $region1: #{_pallas_forward.1} parent=0
    #allocation3 [shape = 'u8[4096]{0}', space=vmem, size = 0x1000, scoped, tag = 'input window, operand 0, single buffered']
    #allocation4 [shape = 's32[1]{0}', space=sflag, size = 0x4, scoped, tag = 'scoped memory for _pallas_forward.1']
    #allocation5 [shape = 's32[1]{0}', space=sflag, size = 0x4, scoped, tag = 'scoped memory for _pallas_forward.1']
    #allocation6 [shape = 'u8[16384]{0}', space=vmem, size = 0x4000, scoped, tag = 'input window, operand 1, single buffered']
    #allocation7 [shape = 's32[1]{0}', space=sflag, size = 0x4, scoped, tag = 'scoped memory for _pallas_forward.1']
    #allocation8 [shape = 'u8[4096]{0}', space=vmem, size = 0x1000, scoped, tag = 'output window, operand 0, single buffered']
    %8 = vsyncpa [#allocation4], 0
    %9 = vsyncpa [#allocation7], 0
    %10 = vsyncpa [#allocation5], 0
    // Predicated region
    $region2: #{_pallas_forward.1} parent=1 // pred_check
      _
    $region3: #{_pallas_forward.1} parent=1 // pred_check_branch
      %12 = sbr.rel (0) target = $region5
    $region4: #{_pallas_forward.1} parent=1 // pred_region
      %s14 = ssub.s32 128, 32
      %15 = vsyncadd [#allocation4], %s14
      %s16 = sshll.u32 [#allocation3], 4
      %s17 = int_to_ptr.vmem [resolvable:$true] %s16
      %22 = dma.hbm_to_vmem [thread:$0]  %s0, 32, %s17, [#allocation4], 32, 32, 2
    $region5: #{_pallas_forward.1} parent=1 // pred_fallthru
      _
    // Predicated region
    $region6: #{_pallas_forward.1} parent=1 // pred_check
      _
    $region7: #{_pallas_forward.1} parent=1 // pred_check_branch
      %24 = sbr.rel (0) target = $region9
    $region8: #{_pallas_forward.1} parent=1 // pred_region
      %s26 = ssub.s32 512, 512
      %27 = vsyncadd [#allocation7], %s26
      %s28 = sshll.u32 [#allocation6], 4
      %s29 = int_to_ptr.vmem [resolvable:$true] %s28
      %34 = dma.hbm_to_vmem [thread:$0]  %s1, 512, %s29, [#allocation7], 128, 128, 8
    $region9: #{_pallas_forward.1} parent=1 // pred_fallthru
      _
    // Predicated region
    $region10: #{_pallas_forward.1} parent=1 // pred_check
      _
    $region11: #{_pallas_forward.1} parent=1 // pred_check_branch
      %36 = sbr.rel (0) target = $region13
    $region12: #{_pallas_forward.1} parent=1 // pred_region
      _
    $region13: #{_pallas_forward.1} parent=1 // pred_fallthru
      _
    // Predicated region
    $region14: #{_pallas_forward.1} parent=1 // pred_check
      _
    $region15: #{_pallas_forward.1} parent=1 // pred_check_branch
      %38 = sbr.rel (0) target = $region17
    $region16: #{_pallas_forward.1} parent=1 // pred_region
      %39 = dma.done [#allocation4], 128
    $region17: #{_pallas_forward.1} parent=1 // pred_fallthru
      _
    // Predicated region
    $region18: #{_pallas_forward.1} parent=1 // pred_check
      _
    $region19: #{_pallas_forward.1} parent=1 // pred_check_branch
      %41 = sbr.rel (0) target = $region21
    $region20: #{_pallas_forward.1} parent=1 // pred_region
      %42 = dma.done [#allocation7], 512
    $region21: #{_pallas_forward.1} parent=1 // pred_fallthru
      _
    %p43 = scmp.eq.s32.totalorder 0, 0
    // Predicated region
    $region22: #{_pallas_forward.1} parent=1 // pred_check
      %p44 = pneg %p43
    $region23: #{_pallas_forward.1} parent=1 // pred_check_branch
      %46 = sbr.rel (%p44) target = $region25
    $region24: #{_pallas_forward.1} parent=1 // pred_region
      %47 = vst [vmem:[#allocation2] sm:$0xff] 0.0
    $region25: #{_pallas_forward.1} parent=1 // pred_fallthru
      _
    %v48 = vld [vmem:[#allocation2] sm:$0xff]
    %v49 = vld [vmem:[#allocation3] sm:$0xff]
    %v50 = vld [vmem:[#allocation6] sm:$0xff]
    %v51 = vld [vmem:[#allocation6 + $0x8] sm:$0xff]
    %v52 = vld [vmem:[#allocation6 + $0x10] sm:$0xff]
    %v53 = vld [vmem:[#allocation6 + $0x18] sm:$0xff]
    %vm54 = vcmask 261120
    %v56 = vsel %vm54, %v49, 0
    %58 = vmatprep.subr.mxu0 0.0
    %59 = vmatpush1.msra.mxu0 %v50
    %60 = vmatprep.subr.mxu0 0.0
    %61 = vmatpush1.msra.mxu0 %v51
    %62 = vmatprep.subr.mxu0 0.0
    %63 = vmatpush1.msra.mxu0 %v52
    %64 = vmatprep.subr.mxu0 0.0
    %65 = vmatpush1.msra.mxu0 %v53
    %66 = vmatprep.subr.mxu0 0.0
    %67 = vmatpush1.msra.mxu0 0.0
    %68 = vmatprep.subr.mxu0 0.0
    %69 = vmatpush1.msra.mxu0 0.0
    %70 = vmatprep.subr.mxu0 0.0
    %71 = vmatpush1.msra.mxu0 0.0
    %72 = vmatprep.subr.mxu0 0.0
    %73 = vmatpush1.msra.mxu0 0.0
    %74 = vmatprep.subr.mxu0 0.0
    %75 = vmatpush1.msra.mxu0 0.0
    %76 = vmatprep.subr.mxu0 0.0
    %77 = vmatpush1.msra.mxu0 0.0
    %78 = vmatprep.subr.mxu0 0.0
    %79 = vmatpush1.msra.mxu0 0.0
    %80 = vmatprep.subr.mxu0 0.0
    %81 = vmatpush1.msra.mxu0 0.0
    %82 = vmatprep.subr.mxu0 0.0
    %83 = vmatpush1.msra.mxu0 0.0
    %84 = vmatprep.subr.mxu0 0.0
    %85 = vmatpush1.msra.mxu0 0.0
    %86 = vmatprep.subr.mxu0 0.0
    %87 = vmatpush1.msra.mxu0 0.0
    %88 = vmatprep.subr.mxu0 0.0
    %89 = vmatpush1.msra.mxu0 0.0
    %90 = vmatprep.subr.mxu0 0.0
    %91 = vmatpush1.msra.mxu0 0.0
    %92 = vmatprep.subr.mxu0 0.0
    %93 = vmatpush1.msra.mxu0 0.0
    %94 = vmatprep.subr.mxu0 0.0
    %95 = vmatpush1.msra.mxu0 0.0
    %96 = vmatprep.subr.mxu0 0.0
    %97 = vmatpush1.msra.mxu0 0.0
    %98 = vmatprep.subr.mxu0 0.0
    %99 = vmatpush1.msra.mxu0 0.0
    %100 = vmatprep.subr.mxu0 0.0
    %101 = vmatpush1.msra.mxu0 0.0
    %102 = vmatprep.subr.mxu0 0.0
    %103 = vmatpush1.msra.mxu0 0.0
    %104 = vmatprep.subr.mxu0 0.0
    %105 = vmatpush1.msra.mxu0 0.0
    %106 = vmatprep.subr.mxu0 0.0
    %107 = vmatpush1.msra.mxu0 0.0
    %108 = vmatprep.subr.mxu0 0.0
    %109 = vmatpush1.msra.mxu0 0.0
    %110 = vmatprep.subr.mxu0 0.0
    %111 = vmatpush1.msra.mxu0 0.0
    %112 = vmatprep.subr.mxu0 0.0
    %113 = vmatpush1.msra.mxu0 0.0
    %114 = vmatprep.subr.mxu0 0.0
    %115 = vmatpush1.msra.mxu0 0.0
    %116 = vmatprep.subr.mxu0 0.0
    %117 = vmatpush1.msra.mxu0 0.0
    %118 = vmatprep.subr.mxu0 0.0
    %119 = vmatpush1.msra.mxu0 0.0
    %120 = vmatprep.subr.mxu0 0.0
    %121 = vmatpush1.msra.mxu0 0.0
    %122 = vmatprep.mubr.f32.mxu0 0.0
    %123 = vmatmul.mubr.f32.gmra.mrb[0].mxu0 %v56
    %v124 = vpop.f32.mrb[0].mxu0
    %v125 = vadd.f32 0.0, %v124
    %v126 = vpop.f32.mrb[0].mxu0
    %127 = vdwg.mxu0
    %v128 = vadd.f32 %v48, %v125
    %129 = vst [vmem:[#allocation2] sm:$0xff] %v128
    // Predicated region
    $region26: #{_pallas_forward.1} parent=1 // pred_check
      %p130 = pneg %p43
    $region27: #{_pallas_forward.1} parent=1 // pred_check_branch
      %132 = sbr.rel (%p130) target = $region29
    $region28: #{_pallas_forward.1} parent=1 // pred_region
      %v133 = vld [vmem:[#allocation2] sm:$0xff]
      %v134 = vld [vmem:[%s2] sm:$0x1]
      %v136 = vlaneseq
      %v137 = vshrl.u32 %v136, 7
      %v138 = vsub.s32 0, %v137
      %v139 = vrot.slane %v134, %v138
      %v141 = vadd.f32 %v133, %v139
      %vm142 = vcmask 23552
      %143 = vst.msk [vmem:[#allocation8] sm:$0xff] %vm142, %v141
    $region29: #{_pallas_forward.1} parent=1 // pred_fallthru
      _
    // Predicated region
    $region30: #{_pallas_forward.1} parent=1 // pred_check
      _
    $region31: #{_pallas_forward.1} parent=1 // pred_check_branch
      %145 = sbr.rel (0) target = $region33
    $region32: #{_pallas_forward.1} parent=1 // pred_region
      %s147 = ssub.s32 128, 32
      %148 = vsyncadd [#allocation5], %s147
      %s149 = sshll.u32 [#allocation8], 4
      %s150 = int_to_ptr.vmem [resolvable:$true] %s149
      %155 = dma.vmem_to_hbm [thread:$0]  %s150, 32, %s3, [#allocation5], 32, 32, 2
    $region33: #{_pallas_forward.1} parent=1 // pred_fallthru
      _
    // Predicated region
    $region34: #{_pallas_forward.1} parent=1 // pred_check
      _
    $region35: #{_pallas_forward.1} parent=1 // pred_check_branch
      %157 = sbr.rel (0) target = $region37
    $region36: #{_pallas_forward.1} parent=1 // pred_region
      %158 = dma.done [#allocation5], 128
    $region37: #{_pallas_forward.1} parent=1 // pred_fallthru
      _
    %159 = vsyncpa [#allocation4], 1
    %160 = vsyncpa [#allocation7], 1
    %161 = vsyncpa [#allocation5], 1

// kernel: _pallas_forward.1
$region0: #{_pallas_forward.1}
  #allocation0 [shape = 'u32[]', space=smem, size = 0x4, offset = 0x4, fixed_abs, tag = 'smem constant byte address 0x4 - core index']
  #allocation1 [shape = 'u32[144,128]{1,0:T(1,128)}', space=vmem, size = 0x12000, scoped, tag = 'internal scratch']
  #allocation2 [shape = 'f32[8,128]{1,0:T(8,128)}', space=vmem, size = 0x1000, scoped, tag = 'scratch operand']
  %s0 = inlined_call_operand.hbm [shape: f32[2,32], index: 0, kind: input, shape index: {}]
  %s1 = inlined_call_operand.hbm [shape: f32[32,128], index: 1, kind: input, shape index: {}]
  %s2 = inlined_call_operand.vmem [shape: f32[1,128], index: 2, kind: input, shape index: {}]
  %s3 = inlined_call_operand.hbm [shape: f32[2,3], index: 3, kind: output, shape index: {}]
  %s4 = sld [smem:[#allocation0]]
  $region38: #{_pallas_forward.1} parent=0
    _
  %s6 = ssub.s32 1, %s4
  %s7 = scalar_select 0, %s6, %s4
  $region1: #{_pallas_forward.1} parent=0
    #allocation3 [shape = 'u8[4096]{0}', space=vmem, size = 0x1000, scoped, tag = 'input window, operand 0, single buffered']
    #allocation4 [shape = 's32[1]{0}', space=sflag, size = 0x4, scoped, tag = 'scoped memory for _pallas_forward.1']
    #allocation5 [shape = 's32[1]{0}', space=sflag, size = 0x4, scoped, tag = 'scoped memory for _pallas_forward.1']
    #allocation6 [shape = 'u8[16384]{0}', space=vmem, size = 0x4000, scoped, tag = 'input window, operand 1, single buffered']
    #allocation7 [shape = 's32[1]{0}', space=sflag, size = 0x4, scoped, tag = 'scoped memory for _pallas_forward.1']
    #allocation8 [shape = 'u8[4096]{0}', space=vmem, size = 0x1000, scoped, tag = 'output window, operand 0, single buffered']
    %8 = vsyncpa [#allocation4], 0
    %9 = vsyncpa [#allocation7], 0
    %10 = vsyncpa [#allocation5], 0
    // Predicated region
    $region2: #{_pallas_forward.1} parent=1 // pred_check
      _
    $region3: #{_pallas_forward.1} parent=1 // pred_check_branch
      %12 = sbr.rel (0) target = $region5
    $region4: #{_pallas_forward.1} parent=1 // pred_region
      %s14 = ssub.s32 128, 32
      %15 = vsyncadd [#allocation4], %s14
      %s16 = sshll.u32 [#allocation3], 4
      %s17 = int_to_ptr.vmem [resolvable:$true] %s16
      %22 = dma.hbm_to_vmem [thread:$0]  %s0, 32, %s17, [#allocation4], 32, 32, 2
    $region5: #{_pallas_forward.1} parent=1 // pred_fallthru
      _
    // Predicated region
    $region6: #{_pallas_forward.1} parent=1 // pred_check
      _
    $region7: #{_pallas_forward.1} parent=1 // pred_check_branch
      %24 = sbr.rel (0) target = $region9
    $region8: #{_pallas_forward.1} parent=1 // pred_region
      %s26 = ssub.s32 512, 512
      %27 = vsyncadd [#allocation7], %s26
      %s28 = sshll.u32 [#allocation6], 4
      %s29 = int_to_ptr.vmem [resolvable:$true] %s28
      %34 = dma.hbm_to_vmem [thread:$0]  %s1, 512, %s29, [#allocation7], 128, 128, 8
    $region9: #{_pallas_forward.1} parent=1 // pred_fallthru
      _
    // Predicated region
    $region10: #{_pallas_forward.1} parent=1 // pred_check
      _
    $region11: #{_pallas_forward.1} parent=1 // pred_check_branch
      %36 = sbr.rel (0) target = $region13
    $region12: #{_pallas_forward.1} parent=1 // pred_region
      _
    $region13: #{_pallas_forward.1} parent=1 // pred_fallthru
      _
    // Predicated region
    $region14: #{_pallas_forward.1} parent=1 // pred_check
      _
    $region15: #{_pallas_forward.1} parent=1 // pred_check_branch
      %38 = sbr.rel (0) target = $region17
    $region16: #{_pallas_forward.1} parent=1 // pred_region
      %39 = dma.done [#allocation4], 128
    $region17: #{_pallas_forward.1} parent=1 // pred_fallthru
      _
    // Predicated region
    $region18: #{_pallas_forward.1} parent=1 // pred_check
      _
    $region19: #{_pallas_forward.1} parent=1 // pred_check_branch
      %41 = sbr.rel (0) target = $region21
    $region20: #{_pallas_forward.1} parent=1 // pred_region
      %42 = dma.done [#allocation7], 512
    $region21: #{_pallas_forward.1} parent=1 // pred_fallthru
      _
    %p43 = scmp.eq.s32.totalorder 0, 0
    // Predicated region
    $region22: #{_pallas_forward.1} parent=1 // pred_check
      %p44 = pneg %p43
    $region23: #{_pallas_forward.1} parent=1 // pred_check_branch
      %46 = sbr.rel (%p44) target = $region25
    $region24: #{_pallas_forward.1} parent=1 // pred_region
      %47 = vst [vmem:[#allocation2] sm:$0xff] 0.0
    $region25: #{_pallas_forward.1} parent=1 // pred_fallthru
      _
    %v48 = vld [vmem:[#allocation2] sm:$0xff]
    %v49 = vld [vmem:[#allocation3] sm:$0xff]
    %v50 = vld [vmem:[#allocation6] sm:$0xff]
    %v51 = vld [vmem:[#allocation6 + $0x8] sm:$0xff]
    %v52 = vld [vmem:[#allocation6 + $0x10] sm:$0xff]
    %v53 = vld [vmem:[#allocation6 + $0x18] sm:$0xff]
    %vm54 = vcmask 261120
    %v56 = vsel %vm54, %v49, 0
    %58 = vmatprep.subr.mxu0 0.0
    %59 = vmatpush1.msra.mxu0 %v50
    %60 = vmatprep.subr.mxu0 0.0
    %61 = vmatpush1.msra.mxu0 %v51
    %62 = vmatprep.subr.mxu0 0.0
    %63 = vmatpush1.msra.mxu0 %v52
    %64 = vmatprep.subr.mxu0 0.0
    %65 = vmatpush1.msra.mxu0 %v53
    %66 = vmatprep.subr.mxu0 0.0
    %67 = vmatpush1.msra.mxu0 0.0
    %68 = vmatprep.subr.mxu0 0.0
    %69 = vmatpush1.msra.mxu0 0.0
    %70 = vmatprep.subr.mxu0 0.0
    %71 = vmatpush1.msra.mxu0 0.0
    %72 = vmatprep.subr.mxu0 0.0
    %73 = vmatpush1.msra.mxu0 0.0
    %74 = vmatprep.subr.mxu0 0.0
    %75 = vmatpush1.msra.mxu0 0.0
    %76 = vmatprep.subr.mxu0 0.0
    %77 = vmatpush1.msra.mxu0 0.0
    %78 = vmatprep.subr.mxu0 0.0
    %79 = vmatpush1.msra.mxu0 0.0
    %80 = vmatprep.subr.mxu0 0.0
    %81 = vmatpush1.msra.mxu0 0.0
    %82 = vmatprep.subr.mxu0 0.0
    %83 = vmatpush1.msra.mxu0 0.0
    %84 = vmatprep.subr.mxu0 0.0
    %85 = vmatpush1.msra.mxu0 0.0
    %86 = vmatprep.subr.mxu0 0.0
    %87 = vmatpush1.msra.mxu0 0.0
    %88 = vmatprep.subr.mxu0 0.0
    %89 = vmatpush1.msra.mxu0 0.0
    %90 = vmatprep.subr.mxu0 0.0
    %91 = vmatpush1.msra.mxu0 0.0
    %92 = vmatprep.subr.mxu0 0.0
    %93 = vmatpush1.msra.mxu0 0.0
    %94 = vmatprep.subr.mxu0 0.0
    %95 = vmatpush1.msra.mxu0 0.0
    %96 = vmatprep.subr.mxu0 0.0
    %97 = vmatpush1.msra.mxu0 0.0
    %98 = vmatprep.subr.mxu0 0.0
    %99 = vmatpush1.msra.mxu0 0.0
    %100 = vmatprep.subr.mxu0 0.0
    %101 = vmatpush1.msra.mxu0 0.0
    %102 = vmatprep.subr.mxu0 0.0
    %103 = vmatpush1.msra.mxu0 0.0
    %104 = vmatprep.subr.mxu0 0.0
    %105 = vmatpush1.msra.mxu0 0.0
    %106 = vmatprep.subr.mxu0 0.0
    %107 = vmatpush1.msra.mxu0 0.0
    %108 = vmatprep.subr.mxu0 0.0
    %109 = vmatpush1.msra.mxu0 0.0
    %110 = vmatprep.subr.mxu0 0.0
    %111 = vmatpush1.msra.mxu0 0.0
    %112 = vmatprep.subr.mxu0 0.0
    %113 = vmatpush1.msra.mxu0 0.0
    %114 = vmatprep.subr.mxu0 0.0
    %115 = vmatpush1.msra.mxu0 0.0
    %116 = vmatprep.subr.mxu0 0.0
    %117 = vmatpush1.msra.mxu0 0.0
    %118 = vmatprep.subr.mxu0 0.0
    %119 = vmatpush1.msra.mxu0 0.0
    %120 = vmatprep.subr.mxu0 0.0
    %121 = vmatpush1.msra.mxu0 0.0
    %122 = vmatprep.mubr.f32.mxu0 0.0
    %123 = vmatmul.mubr.f32.gmra.mrb[0].mxu0 %v56
    %v124 = vpop.f32.mrb[0].mxu0
    %v125 = vadd.f32 0.0, %v124
    %v126 = vpop.f32.mrb[0].mxu0
    %127 = vdwg.mxu0
    %v128 = vadd.f32 %v48, %v125
    %129 = vst [vmem:[#allocation2] sm:$0xff] %v128
    // Predicated region
    $region26: #{_pallas_forward.1} parent=1 // pred_check
      %p130 = pneg %p43
    $region27: #{_pallas_forward.1} parent=1 // pred_check_branch
      %132 = sbr.rel (%p130) target = $region29
    $region28: #{_pallas_forward.1} parent=1 // pred_region
      %v133 = vld [vmem:[#allocation2] sm:$0xff]
      %v134 = vld [vmem:[%s2] sm:$0x1]
      %v136 = vlaneseq
      %v137 = vshrl.u32 %v136, 7
      %v138 = vsub.s32 0, %v137
      %v139 = vrot.slane %v134, %v138
      %v141 = vadd.f32 %v133, %v139
      %vm142 = vcmask 23552
      %143 = vst.msk [vmem:[#allocation8] sm:$0xff] %vm142, %v141
    $region29: #{_pallas_forward.1} parent=1 // pred_fallthru
      _
    // Predicated region
    $region30: #{_pallas_forward.1} parent=1 // pred_check
      _
    $region31: #{_pallas_forward.1} parent=1 // pred_check_branch
      %145 = sbr.rel (0) target = $region33
    $region32: #{_pallas_forward.1} parent=1 // pred_region
      %s147 = ssub.s32 128, 32
      %148 = vsyncadd [#allocation5], %s147
      %s149 = sshll.u32 [#allocation8], 4
      %s150 = int_to_ptr.vmem [resolvable:$true] %s149
      %155 = dma.vmem_to_hbm [thread:$0]  %s150, 32, %s3, [#allocation5], 32, 32, 2
    $region33: #{_pallas_forward.1} parent=1 // pred_fallthru
      _
    // Predicated region
    $region34: #{_pallas_forward.1} parent=1 // pred_check
      _
    $region35: #{_pallas_forward.1} parent=1 // pred_check_branch
      %157 = sbr.rel (0) target = $region37
    $region36: #{_pallas_forward.1} parent=1 // pred_region
      %158 = dma.done [#allocation5], 128
    $region37: #{_pallas_forward.1} parent=1 // pred_fallthru
      _
    %159 = vsyncpa [#allocation4], 1
    %160 = vsyncpa [#allocation7], 1
    %161 = vsyncpa [#allocation5], 1

</llo_original>
